<compile_context>
chip_gen: v5e
topology: v5e:2x2
jax: 0.10.0
libtpu: 0.0.40
codegen_flags: <defaults>
</compile_context>

<pallas_src>
import functools

import jax
import jax.numpy as jnp
from jax import lax
from jax.experimental import pallas as pl
from jax.experimental.pallas import tpu as pltpu

LN_EPS = 1e-12


# ------------------------------ Pallas kernel ------------------------------

def _self_output_kernel(eps, x_ref, res_ref, w_ref, b_ref, g_ref, beta_ref,
                        out_ref):
    """out = LayerNorm(x @ W + b + residual) for one row tile (tm, H)."""
    # Dense projection on the MXU: bf16 x bf16 -> f32 accumulation.
    y = jnp.dot(x_ref[...], w_ref[...], preferred_element_type=jnp.float32)
    # Bias + residual (dropout is identity in eval mode), f32 on the VPU.
    y = y + b_ref[...] + res_ref[...].astype(jnp.float32)
    # LayerNorm over the (lane-dense) hidden axis — single-pass statistics.
    mu = jnp.mean(y, axis=-1, keepdims=True)
    var = jnp.mean(y * y, axis=-1, keepdims=True) - mu * mu
    var = jnp.maximum(var, 0.0)                      # guard f32 cancellation
    rstd = lax.rsqrt(var + eps)
    out_ref[...] = ((y - mu) * rstd * g_ref[...] + beta_ref[...]).astype(out_ref.dtype)


# --------------------------------- wrapper ----------------------------------

def prepare_qformer_self_output_params(weight, bias, gamma, beta):
    """Call ONCE at model load.  weight: [in, out] (= nn.Linear.weight.T)."""
    H = weight.shape[0]
    return dict(
        w=weight.astype(jnp.bfloat16),                 # hoisted per-call cast
        b=bias.reshape(1, H).astype(jnp.float32),
        g=gamma.reshape(1, H).astype(jnp.float32),
        beta=beta.reshape(1, H).astype(jnp.float32),
    )


def _choose_row_tile(rows, hidden):
    """Row tile: single tile for small M; otherwise >=2 tiles, VMEM-budgeted."""
    # ~20 B per row-element of double-buffered activation tiles
    # (x bf16 + residual f32 + output f32, 2 buffers each); budget ~12 MiB.
    cap = max(8, min(512, ((12 * 1024 * 1024) // (20 * hidden)) // 8 * 8))
    if rows < 256:
        # Splitting a tiny-M problem only adds ~0.35 us/step and starves the
        # MXU M dimension; a full-extent block is always layout-legal.
        return rows
    # >= 2 tiles (each >= 128 rows) so v7x's two TensorCores both get work;
    # multiple-of-8 rows, last tile may be ragged (masked by Pallas).
    half = (((rows + 1) // 2) + 7) // 8 * 8
    return min(cap, half)


def qformer_self_output(hidden_states, input_tensor, params, *, eps=LN_EPS,
                        out_dtype=None):
    """InstructBlipQFormerSelfOutput.forward (eval mode).

    hidden_states, input_tensor: [..., H] (same shape)
    params: output of prepare_qformer_self_output_params.
    """
    orig_shape = hidden_states.shape
    H = orig_shape[-1]
    if out_dtype is None:
        out_dtype = hidden_states.dtype

    x = hidden_states.reshape(-1, H)
    if x.dtype != jnp.bfloat16:
        x = x.astype(jnp.bfloat16)                     # halve the x HBM stream
    res = input_tensor.reshape(-1, H)                  # streamed as-is
    rows = x.shape[0]

    tm = _choose_row_tile(rows, H)
    grid = (pl.cdiv(rows, tm),)

    out = pl.pallas_call(
        functools.partial(_self_output_kernel, eps),
        out_shape=jax.ShapeDtypeStruct((rows, H), out_dtype),
        grid=grid,
        in_specs=[
            pl.BlockSpec((tm, H), lambda i: (i, 0)),   # x rows (bf16)
            pl.BlockSpec((tm, H), lambda i: (i, 0)),   # residual rows
            pl.BlockSpec((H, H), lambda i: (0, 0),     # weight: resident, single buffer
                         pipeline_mode=pl.Buffered(1)),
            pl.BlockSpec((1, H), lambda i: (0, 0)),    # bias
            pl.BlockSpec((1, H), lambda i: (0, 0)),    # LN gamma
            pl.BlockSpec((1, H), lambda i: (0, 0)),    # LN beta
        ],
        out_specs=pl.BlockSpec((tm, H), lambda i: (i, 0)),
        compiler_params=pltpu.CompilerParams(
            dimension_semantics=("parallel",),         # shard row tiles across TCs
            vmem_limit_bytes=32 * 1024 * 1024,
        ),
    )(x, res, params["w"], params["b"], params["g"], params["beta"])

    return out.reshape(orig_shape)


# ----------------------------- pure-JAX reference ----------------------------

def _ref_self_output(hidden_states, input_tensor, weight, bias, gamma, beta,
                     *, eps=LN_EPS, cast_dtype=None):
    h, w = hidden_states, weight
    if cast_dtype is not None:                         # mirror kernel numerics
        h = h.astype(cast_dtype)
        w = w.astype(cast_dtype)
    y = jnp.dot(h, w, preferred_element_type=jnp.float32)
    y = y + bias + input_tensor.astype(jnp.float32)
    mu = jnp.mean(y, axis=-1, keepdims=True)
    var = jnp.mean(jnp.square(y - mu), axis=-1, keepdims=True)
    return (y - mu) * lax.rsqrt(var + eps) * gamma + beta


# ----------------------------------- main ------------------------------------

if __name__ == "__main__":
    B, S, H = 2, 8, 256   # small, hidden kept a multiple of 128 (lane-dense)

    key = jax.random.PRNGKey(0)
    k_x, k_res, k_w, k_b, k_g, k_beta = jax.random.split(key, 6)

    hidden_states = jax.random.normal(k_x, (B, S, H), jnp.float32)
    input_tensor = jax.random.normal(k_res, (B, S, H), jnp.float32)
    weight = 0.02 * jax.random.normal(k_w, (H, H), jnp.float32)   # [in, out]
    bias = 0.02 * jax.random.normal(k_b, (H,), jnp.float32)
    gamma = 1.0 + 0.1 * jax.random.normal(k_g, (H,), jnp.float32)
    beta = 0.1 * jax.random.normal(k_beta, (H,), jnp.float32)

    params = prepare_qformer_self_output_params(weight, bias, gamma, beta)

    out = jax.block_until_ready(
        qformer_self_output(hidden_states, input_tensor, params))
    assert out.shape == (B, S, H) and out.dtype == jnp.float32

    # Matched reference (same bf16-matmul / f32-LN numerics as the kernel).
    ref_bf16 = _ref_self_output(hidden_states, input_tensor, weight, bias,
                                gamma, beta, cast_dtype=jnp.bfloat16)
    err_matched = float(jnp.max(jnp.abs(out - ref_bf16)))
    assert jnp.allclose(out, ref_bf16, rtol=2e-3, atol=2e-3), err_matched

    # Full-f32 module semantics (loose tolerance covers bf16 matmul rounding).
    ref_f32 = _ref_self_output(hidden_states, input_tensor, weight, bias,
                               gamma, beta)
    err_f32 = float(jnp.max(jnp.abs(out - ref_f32)))
    assert jnp.allclose(out, ref_f32, rtol=5e-2, atol=5e-2), err_f32

    # Ragged-rows path: 2 row tiles, masked partial last tile (LN is row-local).
    S2 = 260
    hs2 = jax.random.normal(jax.random.PRNGKey(1), (1, S2, H), jnp.float32)
    res2 = jax.random.normal(jax.random.PRNGKey(2), (1, S2, H), jnp.float32)
    out2 = jax.block_until_ready(qformer_self_output(hs2, res2, params))
    ref2 = _ref_self_output(hs2, res2, weight, bias, gamma, beta,
                            cast_dtype=jnp.bfloat16)
    err2 = float(jnp.max(jnp.abs(out2 - ref2)))
    assert jnp.allclose(out2, ref2, rtol=2e-3, atol=2e-3), err2

    print("KERNEL_OK")
</pallas_src>

<mosaic_0001>
module attributes {stable_mosaic.version = 11 : i64} {
  func.func @_self_output_kernel(%arg0: i32, %arg1: memref<16x256xbf16, #tpu.memory_space<vmem>>, %arg2: memref<16x256xf32, #tpu.memory_space<vmem>>, %arg3: memref<256x256xbf16, #tpu.memory_space<vmem>>, %arg4: memref<1x256xf32, #tpu.memory_space<vmem>>, %arg5: memref<1x256xf32, #tpu.memory_space<vmem>>, %arg6: memref<1x256xf32, #tpu.memory_space<vmem>>, %arg7: memref<16x256xf32, #tpu.memory_space<vmem>>) attributes {dimension_semantics = [#tpu.dimension_semantics<parallel>], iteration_bounds = array<i64: 1>, scalar_prefetch = 0 : i64, scratch_operands = 0 : i64, tpu.core_type = #tpu.core_type<tc>, window_params = [{transform_indices = @transform_0, window_bounds = array<i64: 16, 256>}, {transform_indices = @transform_1, window_bounds = array<i64: 16, 256>}, {pipeline_mode = #tpu.pipeline_mode<synchronous>, transform_indices = @transform_2, window_bounds = array<i64: 256, 256>}, {pipeline_mode = #tpu.pipeline_mode<synchronous>, transform_indices = @transform_3, window_bounds = array<i64: 1, 256>}, {pipeline_mode = #tpu.pipeline_mode<synchronous>, transform_indices = @transform_4, window_bounds = array<i64: 1, 256>}, {pipeline_mode = #tpu.pipeline_mode<synchronous>, transform_indices = @transform_5, window_bounds = array<i64: 1, 256>}, {transform_indices = @transform_6, window_bounds = array<i64: 16, 256>}]} {
    %c0 = arith.constant 0 : index
    %c0_0 = arith.constant 0 : index
    %0 = vector.load %arg1[%c0, %c0_0] : memref<16x256xbf16, #tpu.memory_space<vmem>>, vector<16x256xbf16>
    %c0_1 = arith.constant 0 : index
    %c0_2 = arith.constant 0 : index
    %1 = vector.load %arg3[%c0_1, %c0_2] : memref<256x256xbf16, #tpu.memory_space<vmem>>, vector<256x256xbf16>
    %cst = arith.constant dense<0.000000e+00> : vector<16x256xf32>
    %2 = tpu.matmul %0, %1, %cst {dimension_numbers = #tpu.dot_dimension_numbers<[1], [0], [0], [1], [0, 0, 1, 1], [], []>} : vector<16x256xbf16>, vector<256x256xbf16>, vector<16x256xf32> -> vector<16x256xf32>
    %c0_3 = arith.constant 0 : index
    %c0_4 = arith.constant 0 : index
    %3 = vector.load %arg4[%c0_3, %c0_4] : memref<1x256xf32, #tpu.memory_space<vmem>>, vector<1x256xf32>
    %4 = vector.broadcast %3 : vector<1x256xf32> to vector<16x256xf32>
    %5 = arith.addf %2, %4 : vector<16x256xf32>
    %c0_5 = arith.constant 0 : index
    %c0_6 = arith.constant 0 : index
    %6 = vector.load %arg2[%c0_5, %c0_6] : memref<16x256xf32, #tpu.memory_space<vmem>>, vector<16x256xf32>
    %7 = arith.addf %5, %6 : vector<16x256xf32>
    %cst_7 = arith.constant dense<0.000000e+00> : vector<16xf32>
    %8 = vector.multi_reduction <add>, %7, %cst_7 [1] : vector<16x256xf32> to vector<16xf32>
    %9 = vector.shape_cast %8 : vector<16xf32> to vector<16x1xf32>
    %cst_8 = arith.constant 2.560000e+02 : f32
    %10 = vector.broadcast %cst_8 : f32 to vector<16x1xf32>
    %11 = arith.divf %9, %10 : vector<16x1xf32>
    %12 = arith.mulf %7, %7 : vector<16x256xf32>
    %cst_9 = arith.constant dense<0.000000e+00> : vector<16xf32>
    %13 = vector.multi_reduction <add>, %12, %cst_9 [1] : vector<16x256xf32> to vector<16xf32>
    %14 = vector.shape_cast %13 : vector<16xf32> to vector<16x1xf32>
    %cst_10 = arith.constant 2.560000e+02 : f32
    %15 = vector.broadcast %cst_10 : f32 to vector<16x1xf32>
    %16 = arith.divf %14, %15 : vector<16x1xf32>
    %17 = arith.mulf %11, %11 : vector<16x1xf32>
    %18 = arith.subf %16, %17 : vector<16x1xf32>
    %cst_11 = arith.constant 0.000000e+00 : f32
    %19 = vector.broadcast %cst_11 : f32 to vector<16x1xf32>
    %20 = arith.maximumf %18, %19 : vector<16x1xf32>
    %cst_12 = arith.constant 9.99999996E-13 : f32
    %21 = vector.broadcast %cst_12 : f32 to vector<16x1xf32>
    %22 = arith.addf %20, %21 : vector<16x1xf32>
    %23 = math.rsqrt %22 : vector<16x1xf32>
    %24 = vector.broadcast %11 : vector<16x1xf32> to vector<16x256xf32>
    %25 = arith.subf %7, %24 : vector<16x256xf32>
    %26 = vector.broadcast %23 : vector<16x1xf32> to vector<16x256xf32>
    %27 = arith.mulf %25, %26 : vector<16x256xf32>
    %c0_13 = arith.constant 0 : index
    %c0_14 = arith.constant 0 : index
    %28 = vector.load %arg5[%c0_13, %c0_14] : memref<1x256xf32, #tpu.memory_space<vmem>>, vector<1x256xf32>
    %29 = vector.broadcast %28 : vector<1x256xf32> to vector<16x256xf32>
    %30 = arith.mulf %27, %29 : vector<16x256xf32>
    %c0_15 = arith.constant 0 : index
    %c0_16 = arith.constant 0 : index
    %31 = vector.load %arg6[%c0_15, %c0_16] : memref<1x256xf32, #tpu.memory_space<vmem>>, vector<1x256xf32>
    %32 = vector.broadcast %31 : vector<1x256xf32> to vector<16x256xf32>
    %33 = arith.addf %30, %32 : vector<16x256xf32>
    %c0_17 = arith.constant 0 : index
    %c0_18 = arith.constant 0 : index
    %34 = vector.load %arg7[%c0_17, %c0_18] : memref<16x256xf32, #tpu.memory_space<vmem>>, vector<16x256xf32>
    tpu.vector_store %arg7[%c0_17, %c0_18], %33 {strides = array<i32>} : memref<16x256xf32, #tpu.memory_space<vmem>>, vector<16x256xf32>,
    return
  }
  func.func @transform_0(%arg0: i32) -> (i32, i32) {
    %c0_i32 = arith.constant 0 : i32
    %c0_i32_0 = arith.constant 0 : i32
    return %arg0, %c0_i32 : i32, i32
  }
  func.func @transform_1(%arg0: i32) -> (i32, i32) {
    %c0_i32 = arith.constant 0 : i32
    %c0_i32_0 = arith.constant 0 : i32
    return %arg0, %c0_i32 : i32, i32
  }
  func.func @transform_2(%arg0: i32) -> (i32, i32) {
    %c0_i32 = arith.constant 0 : i32
    %c0_i32_0 = arith.constant 0 : i32
    %c0_i32_1 = arith.constant 0 : i32
    return %c0_i32, %c0_i32_0 : i32, i32
  }
  func.func @transform_3(%arg0: i32) -> (i32, i32) {
    %c0_i32 = arith.constant 0 : i32
    %c0_i32_0 = arith.constant 0 : i32
    %c0_i32_1 = arith.constant 0 : i32
    return %c0_i32, %c0_i32_0 : i32, i32
  }
  func.func @transform_4(%arg0: i32) -> (i32, i32) {
    %c0_i32 = arith.constant 0 : i32
    %c0_i32_0 = arith.constant 0 : i32
    %c0_i32_1 = arith.constant 0 : i32
    return %c0_i32, %c0_i32_0 : i32, i32
  }
  func.func @transform_5(%arg0: i32) -> (i32, i32) {
    %c0_i32 = arith.constant 0 : i32
    %c0_i32_0 = arith.constant 0 : i32
    %c0_i32_1 = arith.constant 0 : i32
    return %c0_i32, %c0_i32_0 : i32, i32
  }
  func.func @transform_6(%arg0: i32) -> (i32, i32) {
    %c0_i32 = arith.constant 0 : i32
    %c0_i32_0 = arith.constant 0 : i32
    return %arg0, %c0_i32 : i32, i32
  }
}

</mosaic_0001>

<llo_original>
// kernel: tpu_custom_call.1
$region0: #{tpu_custom_call.1}
  #allocation0 [shape = 'u32[]', space=smem, size = 0x4, offset = 0x4, fixed_abs, tag = 'smem constant byte address 0x4 - core index']
  #allocation1 [shape = 'u32[72,128]{1,0:T(1,128)}', space=vmem, size = 0x9000, scoped, tag = 'internal scratch']
  %s0 = inlined_call_operand.hbm [shape: bf16[16,256], index: 0, kind: input, shape index: {}]
  %s1 = inlined_call_operand.hbm [shape: f32[16,256], index: 1, kind: input, shape index: {}]
  %s2 = inlined_call_operand.hbm [shape: bf16[256,256], index: 2, kind: input, shape index: {}]
  %s3 = inlined_call_operand.vmem [shape: f32[1,256], index: 3, kind: input, shape index: {}]
  %s4 = inlined_call_operand.hbm [shape: f32[1,256], index: 4, kind: input, shape index: {}]
  %s5 = inlined_call_operand.vmem [shape: f32[1,256], index: 5, kind: input, shape index: {}]
  %s6 = inlined_call_operand.hbm [shape: f32[16,256], index: 6, kind: output, shape index: {}]
  %s7 = sld [smem:[#allocation0]]
  $region50: #{tpu_custom_call.1} parent=0
    _
  %s9 = ssub.s32 1, %s7
  %s10 = scalar_select 0, %s9, %s7
  $region1: #{tpu_custom_call.1} parent=0
    #allocation2 [shape = 'u8[8192]{0}', space=vmem, size = 0x2000, scoped, tag = 'input window, operand 0, single buffered']
    #allocation3 [shape = 's32[1]{0}', space=sflag, size = 0x4, scoped, tag = 'scoped memory for tpu_custom_call.1']
    #allocation4 [shape = 's32[1]{0}', space=sflag, size = 0x4, scoped, tag = 'scoped memory for tpu_custom_call.1']
    #allocation5 [shape = 'u8[16384]{0}', space=vmem, size = 0x4000, scoped, tag = 'input window, operand 1, single buffered']
    #allocation6 [shape = 's32[1]{0}', space=sflag, size = 0x4, scoped, tag = 'scoped memory for tpu_custom_call.1']
    #allocation7 [shape = 'u8[131072]{0}', space=vmem, size = 0x20000, scoped, tag = 'input window, operand 2, single buffered']
    #allocation8 [shape = 'u8[1024]{0}', space=vmem, size = 0x400, scoped, tag = 'input window, operand 4, single buffered']
    #allocation9 [shape = 's32[1]{0}', space=sflag, size = 0x4, scoped, tag = 'scoped memory for tpu_custom_call.1']
    #allocation10 [shape = 'u8[16384]{0}', space=vmem, size = 0x4000, scoped, tag = 'output window, operand 0, single buffered']
    %11 = vsyncpa [#allocation3], 0
    %12 = vsyncpa [#allocation6], 0
    %13 = vsyncpa [#allocation9], 0
    %14 = vsyncpa [#allocation4], 0
    // Predicated region
    $region2: #{tpu_custom_call.1} parent=1 // pred_check
      _
    $region3: #{tpu_custom_call.1} parent=1 // pred_check_branch
      %16 = sbr.rel (0) target = $region5
    $region4: #{tpu_custom_call.1} parent=1 // pred_region
      %18 = vsyncadd [#allocation3], 0
      %s19 = sshll.u32 %s0, 4
      %s20 = int_to_ptr.hbm [resolvable:$true] %s19
      %s21 = sshll.u32 [#allocation2], 4
      %s22 = int_to_ptr.vmem [resolvable:$true] %s21
      %27 = dma.hbm_to_vmem [thread:$0]  %s20, 256, %s22, [#allocation3], 128, 128, 8
    $region5: #{tpu_custom_call.1} parent=1 // pred_fallthru
      _
    // Predicated region
    $region6: #{tpu_custom_call.1} parent=1 // pred_check
      _
    $region7: #{tpu_custom_call.1} parent=1 // pred_check_branch
      %29 = sbr.rel (0) target = $region9
    $region8: #{tpu_custom_call.1} parent=1 // pred_region
      %31 = vsyncadd [#allocation6], 0
      %s32 = sshll.u32 %s1, 4
      %s33 = int_to_ptr.hbm [resolvable:$true] %s32
      %s34 = sshll.u32 [#allocation5], 4
      %s35 = int_to_ptr.vmem [resolvable:$true] %s34
      %40 = dma.hbm_to_vmem [thread:$0]  %s33, 512, %s35, [#allocation6], 256, 256, 16
    $region9: #{tpu_custom_call.1} parent=1 // pred_fallthru
      _
    // Predicated region
    $region10: #{tpu_custom_call.1} parent=1 // pred_check
      _
    $region11: #{tpu_custom_call.1} parent=1 // pred_check_branch
      %42 = sbr.rel (0) target = $region13
    $region12: #{tpu_custom_call.1} parent=1 // pred_region
      %44 = vsyncadd [#allocation6], 0
      %s45 = sshll.u32 %s2, 4
      %s46 = int_to_ptr.hbm [resolvable:$true] %s45
      %s47 = sshll.u32 [#allocation7], 4
      %s48 = int_to_ptr.vmem [resolvable:$true] %s47
      %53 = dma.hbm_to_vmem [thread:$0]  %s46, 4096, %s48, [#allocation6], 128, 128, 8
    $region13: #{tpu_custom_call.1} parent=1 // pred_fallthru
      _
    // Predicated region
    $region14: #{tpu_custom_call.1} parent=1 // pred_check
      _
    $region15: #{tpu_custom_call.1} parent=1 // pred_check_branch
      %55 = sbr.rel (0) target = $region17
    $region16: #{tpu_custom_call.1} parent=1 // pred_region
      _
    $region17: #{tpu_custom_call.1} parent=1 // pred_fallthru
      _
    // Predicated region
    $region18: #{tpu_custom_call.1} parent=1 // pred_check
      _
    $region19: #{tpu_custom_call.1} parent=1 // pred_check_branch
      %57 = sbr.rel (0) target = $region21
    $region20: #{tpu_custom_call.1} parent=1 // pred_region
      %59 = vsyncadd [#allocation9], 0
      %s61 = sshll.u32 %s4, 4
      %s62 = int_to_ptr.hbm [resolvable:$true] %s61
      %s63 = sshll.u32 [#allocation8], 4
      %s64 = int_to_ptr.vmem [resolvable:$true] %s63
      %66 = dma.hbm_to_vmem [thread:$0]  %s62, 32, %s64, [#allocation9]
    $region21: #{tpu_custom_call.1} parent=1 // pred_fallthru
      _
    // Predicated region
    $region22: #{tpu_custom_call.1} parent=1 // pred_check
      _
    $region23: #{tpu_custom_call.1} parent=1 // pred_check_branch
      %68 = sbr.rel (0) target = $region25
    $region24: #{tpu_custom_call.1} parent=1 // pred_region
      _
    $region25: #{tpu_custom_call.1} parent=1 // pred_fallthru
      _
    // Predicated region
    $region26: #{tpu_custom_call.1} parent=1 // pred_check
      _
    $region27: #{tpu_custom_call.1} parent=1 // pred_check_branch
      %70 = sbr.rel (0) target = $region29
    $region28: #{tpu_custom_call.1} parent=1 // pred_region
      %72 = dma.done [#allocation3], 256
    $region29: #{tpu_custom_call.1} parent=1 // pred_fallthru
      _
    // Predicated region
    $region30: #{tpu_custom_call.1} parent=1 // pred_check
      _
    $region31: #{tpu_custom_call.1} parent=1 // pred_check_branch
      %74 = sbr.rel (0) target = $region33
    $region32: #{tpu_custom_call.1} parent=1 // pred_region
      %76 = dma.done [#allocation6], 512
    $region33: #{tpu_custom_call.1} parent=1 // pred_fallthru
      _
    // Predicated region
    $region34: #{tpu_custom_call.1} parent=1 // pred_check
      _
    $region35: #{tpu_custom_call.1} parent=1 // pred_check_branch
      %78 = sbr.rel (0) target = $region37
    $region36: #{tpu_custom_call.1} parent=1 // pred_region
      %80 = dma.done [#allocation6], 4096
    $region37: #{tpu_custom_call.1} parent=1 // pred_fallthru
      _
    // Predicated region
    $region38: #{tpu_custom_call.1} parent=1 // pred_check
      _
    $region39: #{tpu_custom_call.1} parent=1 // pred_check_branch
      %82 = sbr.rel (0) target = $region41
    $region40: #{tpu_custom_call.1} parent=1 // pred_region
      %84 = dma.done [#allocation9], 32
    $region41: #{tpu_custom_call.1} parent=1 // pred_fallthru
      _
    %v85 = vld [vmem:[#allocation2] sm:$0xff]
    %v86 = vld [vmem:[#allocation2 + $0x8] sm:$0xff]
    %v87 = vld [vmem:[#allocation7] sm:$0xff]
    %v88 = vld [vmem:[#allocation7 + $0x8] sm:$0xff]
    %v89 = vld [vmem:[#allocation7 + $0x10] sm:$0xff]
    %v90 = vld [vmem:[#allocation7 + $0x18] sm:$0xff]
    %v91 = vld [vmem:[#allocation7 + $0x20] sm:$0xff]
    %v92 = vld [vmem:[#allocation7 + $0x28] sm:$0xff]
    %v93 = vld [vmem:[#allocation7 + $0x30] sm:$0xff]
    %v94 = vld [vmem:[#allocation7 + $0x38] sm:$0xff]
    %v95 = vld [vmem:[#allocation7 + $0x40] sm:$0xff]
    %v96 = vld [vmem:[#allocation7 + $0x48] sm:$0xff]
    %v97 = vld [vmem:[#allocation7 + $0x50] sm:$0xff]
    %v98 = vld [vmem:[#allocation7 + $0x58] sm:$0xff]
    %v99 = vld [vmem:[#allocation7 + $0x60] sm:$0xff]
    %v100 = vld [vmem:[#allocation7 + $0x68] sm:$0xff]
    %v101 = vld [vmem:[#allocation7 + $0x70] sm:$0xff]
    %v102 = vld [vmem:[#allocation7 + $0x78] sm:$0xff]
    %v103 = vld [vmem:[#allocation7 + $0x80] sm:$0xff]
    %v104 = vld [vmem:[#allocation7 + $0x88] sm:$0xff]
    %v105 = vld [vmem:[#allocation7 + $0x90] sm:$0xff]
    %v106 = vld [vmem:[#allocation7 + $0x98] sm:$0xff]
    %v107 = vld [vmem:[#allocation7 + $0xa0] sm:$0xff]
    %v108 = vld [vmem:[#allocation7 + $0xa8] sm:$0xff]
    %v109 = vld [vmem:[#allocation7 + $0xb0] sm:$0xff]
    %v110 = vld [vmem:[#allocation7 + $0xb8] sm:$0xff]
    %v111 = vld [vmem:[#allocation7 + $0xc0] sm:$0xff]
    %v112 = vld [vmem:[#allocation7 + $0xc8] sm:$0xff]
    %v113 = vld [vmem:[#allocation7 + $0xd0] sm:$0xff]
    %v114 = vld [vmem:[#allocation7 + $0xd8] sm:$0xff]
    %v115 = vld [vmem:[#allocation7 + $0xe0] sm:$0xff]
    %v116 = vld [vmem:[#allocation7 + $0xe8] sm:$0xff]
    %v117 = vld [vmem:[#allocation7 + $0xf0] sm:$0xff]
    %v118 = vld [vmem:[#allocation7 + $0xf8] sm:$0xff]
    %v119 = vld [vmem:[%s3] sm:$0x3]
    %v121 = vperm.slane %v119, 0
    %v122 = vperm.slane %v119, 1
    %v127 = vunpack.c.l.b16 %v85
    %v128 = vunpack.c.h.b16 %v85
    %v129 = vunpack.c.l.b16 %v86
    %v130 = vunpack.c.h.b16 %v86
    %v131 = vpack.c.b16 %v129, %v127
    %v132 = vpack.c.b16 %v130, %v128
    %v167 = vunpack.c.l.b16 %v87
    %v168 = vunpack.c.h.b16 %v87
    %v169 = vunpack.c.l.b16 %v88
    %v170 = vunpack.c.h.b16 %v88
    %v171 = vunpack.c.l.b16 %v89
    %v172 = vunpack.c.h.b16 %v89
    %v173 = vunpack.c.l.b16 %v90
    %v174 = vunpack.c.h.b16 %v90
    %v175 = vunpack.c.l.b16 %v91
    %v176 = vunpack.c.h.b16 %v91
    %v177 = vunpack.c.l.b16 %v92
    %v178 = vunpack.c.h.b16 %v92
    %v179 = vunpack.c.l.b16 %v93
    %v180 = vunpack.c.h.b16 %v93
    %v181 = vunpack.c.l.b16 %v94
    %v182 = vunpack.c.h.b16 %v94
    %v183 = vunpack.c.l.b16 %v95
    %v184 = vunpack.c.h.b16 %v95
    %v185 = vunpack.c.l.b16 %v96
    %v186 = vunpack.c.h.b16 %v96
    %v187 = vunpack.c.l.b16 %v97
    %v188 = vunpack.c.h.b16 %v97
    %v189 = vunpack.c.l.b16 %v98
    %v190 = vunpack.c.h.b16 %v98
    %v191 = vunpack.c.l.b16 %v99
    %v192 = vunpack.c.h.b16 %v99
    %v193 = vunpack.c.l.b16 %v100
    %v194 = vunpack.c.h.b16 %v100
    %v195 = vunpack.c.l.b16 %v101
    %v196 = vunpack.c.h.b16 %v101
    %v197 = vunpack.c.l.b16 %v102
    %v198 = vunpack.c.h.b16 %v102
    %v199 = vunpack.c.l.b16 %v103
    %v200 = vunpack.c.h.b16 %v103
    %v201 = vunpack.c.l.b16 %v104
    %v202 = vunpack.c.h.b16 %v104
    %v203 = vunpack.c.l.b16 %v105
    %v204 = vunpack.c.h.b16 %v105
    %v205 = vunpack.c.l.b16 %v106
    %v206 = vunpack.c.h.b16 %v106
    %v207 = vunpack.c.l.b16 %v107
    %v208 = vunpack.c.h.b16 %v107
    %v209 = vunpack.c.l.b16 %v108
    %v210 = vunpack.c.h.b16 %v108
    %v211 = vunpack.c.l.b16 %v109
    %v212 = vunpack.c.h.b16 %v109
    %v213 = vunpack.c.l.b16 %v110
    %v214 = vunpack.c.h.b16 %v110
    %v215 = vunpack.c.l.b16 %v111
    %v216 = vunpack.c.h.b16 %v111
    %v217 = vunpack.c.l.b16 %v112
    %v218 = vunpack.c.h.b16 %v112
    %v219 = vunpack.c.l.b16 %v113
    %v220 = vunpack.c.h.b16 %v113
    %v221 = vunpack.c.l.b16 %v114
    %v222 = vunpack.c.h.b16 %v114
    %v223 = vunpack.c.l.b16 %v115
    %v224 = vunpack.c.h.b16 %v115
    %v225 = vunpack.c.l.b16 %v116
    %v226 = vunpack.c.h.b16 %v116
    %v227 = vunpack.c.l.b16 %v117
    %v228 = vunpack.c.h.b16 %v117
    %v229 = vunpack.c.l.b16 %v118
    %v230 = vunpack.c.h.b16 %v118
    %v231 = vpack.c.b16 %v169, %v167
    %v232 = vpack.c.b16 %v170, %v168
    %v233 = vpack.c.b16 %v173, %v171
    %v234 = vpack.c.b16 %v174, %v172
    %v235 = vpack.c.b16 %v177, %v175
    %v236 = vpack.c.b16 %v178, %v176
    %v237 = vpack.c.b16 %v181, %v179
    %v238 = vpack.c.b16 %v182, %v180
    %v239 = vpack.c.b16 %v185, %v183
    %v240 = vpack.c.b16 %v186, %v184
    %v241 = vpack.c.b16 %v189, %v187
    %v242 = vpack.c.b16 %v190, %v188
    %v243 = vpack.c.b16 %v193, %v191
    %v244 = vpack.c.b16 %v194, %v192
    %v245 = vpack.c.b16 %v197, %v195
    %v246 = vpack.c.b16 %v198, %v196
    %v247 = vpack.c.b16 %v201, %v199
    %v248 = vpack.c.b16 %v202, %v200
    %v249 = vpack.c.b16 %v205, %v203
    %v250 = vpack.c.b16 %v206, %v204
    %v251 = vpack.c.b16 %v209, %v207
    %v252 = vpack.c.b16 %v210, %v208
    %v253 = vpack.c.b16 %v213, %v211
    %v254 = vpack.c.b16 %v214, %v212
    %v255 = vpack.c.b16 %v217, %v215
    %v256 = vpack.c.b16 %v218, %v216
    %v257 = vpack.c.b16 %v221, %v219
    %v258 = vpack.c.b16 %v222, %v220
    %v259 = vpack.c.b16 %v225, %v223
    %v260 = vpack.c.b16 %v226, %v224
    %v261 = vpack.c.b16 %v229, %v227
    %v262 = vpack.c.b16 %v230, %v228
    %295 = vmatpush.bf16.msra.mxu0 %v245
    %296 = vmatpush.bf16.msra.mxu0 %v243
    %297 = vmatpush.bf16.msra.mxu0 %v241
    %298 = vmatpush.bf16.msra.mxu0 %v239
    %299 = vmatpush.bf16.msra.mxu0 %v237
    %300 = vmatpush.bf16.msra.mxu0 %v235
    %301 = vmatpush.bf16.msra.mxu0 %v233
    %302 = vmatpush.bf16.msra.mxu0 %v231
    %303 = vmatmul.bf16.gmra.mxu0 %v131
    %v304 = vpop.f32.mrf.mxu0
    %v305 = vadd.f32 %v121, %v304
    %v306 = vpop.f32.mrf.mxu0
    %v307 = vadd.f32 %v121, %v306
    %308 = vdwg.mxu0
    %309 = vmatpush.bf16.msra.mxu0 %v261
    %310 = vmatpush.bf16.msra.mxu0 %v259
    %311 = vmatpush.bf16.msra.mxu0 %v257
    %312 = vmatpush.bf16.msra.mxu0 %v255
    %313 = vmatpush.bf16.msra.mxu0 %v253
    %314 = vmatpush.bf16.msra.mxu0 %v251
    %315 = vmatpush.bf16.msra.mxu0 %v249
    %316 = vmatpush.bf16.msra.mxu0 %v247
    %317 = vmatmul.bf16.gmra.mxu0 %v132
    %v318 = vpop.f32.mrf.mxu0
    %v319 = vadd.f32 %v305, %v318
    %v320 = vpop.f32.mrf.mxu0
    %v321 = vadd.f32 %v307, %v320
    %322 = vdwg.mxu0
    %323 = vmatpush.bf16.msra.mxu0 %v246
    %324 = vmatpush.bf16.msra.mxu0 %v244
    %325 = vmatpush.bf16.msra.mxu0 %v242
    %326 = vmatpush.bf16.msra.mxu0 %v240
    %327 = vmatpush.bf16.msra.mxu0 %v238
    %328 = vmatpush.bf16.msra.mxu0 %v236
    %329 = vmatpush.bf16.msra.mxu0 %v234
    %330 = vmatpush.bf16.msra.mxu0 %v232
    %331 = vmatmul.bf16.gmra.mxu0 %v131
    %v332 = vpop.f32.mrf.mxu0
    %v333 = vadd.f32 %v122, %v332
    %v334 = vpop.f32.mrf.mxu0
    %v335 = vadd.f32 %v122, %v334
    %336 = vdwg.mxu0
    %337 = vmatpush.bf16.msra.mxu0 %v262
    %338 = vmatpush.bf16.msra.mxu0 %v260
    %339 = vmatpush.bf16.msra.mxu0 %v258
    %340 = vmatpush.bf16.msra.mxu0 %v256
    %341 = vmatpush.bf16.msra.mxu0 %v254
    %342 = vmatpush.bf16.msra.mxu0 %v252
    %343 = vmatpush.bf16.msra.mxu0 %v250
    %344 = vmatpush.bf16.msra.mxu0 %v248
    %345 = vmatmul.bf16.gmra.mxu0 %v132
    %v346 = vpop.f32.mrf.mxu0
    %v347 = vadd.f32 %v333, %v346
    %v348 = vpop.f32.mrf.mxu0
    %v349 = vadd.f32 %v335, %v348
    %350 = vdwg.mxu0
    %v351 = vld [vmem:[#allocation5] sm:$0xff]
    %v352 = vld [vmem:[#allocation5 + $0x8] sm:$0xff]
    %v353 = vld [vmem:[#allocation5 + $0x10] sm:$0xff]
    %v354 = vld [vmem:[#allocation5 + $0x18] sm:$0xff]
    %v355 = vadd.f32 %v319, %v351
    %v356 = vadd.f32 %v347, %v352
    %v357 = vadd.f32 %v321, %v353
    %v358 = vadd.f32 %v349, %v354
    %v359 = vadd.f32 %v355, %v356
    %360 = vadd.xlane.f32.xlu0 %v359
    %v361 = vpop.xlane.xlu0 %360
    %v362 = vadd.f32 %v357, %v358
    %363 = vadd.xlane.f32.xlu0 %v362
    %v364 = vpop.xlane.xlu0 %363
    %v365 = vrcp.pop 256.0
    %v366 = vmul.f32 256.0, %v365
    %v367 = vsub.f32 1.0, %v366
    %v368 = vmul.f32 %v365, %v367
    %v369 = vadd.f32 %v365, %v368
    %vm370 = vweird.f32 %v365
    %v371 = vsel %vm370, %v365, %v369
    %v372 = vmul.f32 %v361, %v371
    %v373 = vmul.f32 %v364, %v371
    %v374 = vmul.f32 %v355, %v355
    %v375 = vmul.f32 %v356, %v356
    %v376 = vmul.f32 %v357, %v357
    %v377 = vmul.f32 %v358, %v358
    %v378 = vadd.f32 %v374, %v375
    %379 = vadd.xlane.f32.xlu0 %v378
    %v380 = vpop.xlane.xlu0 %379
    %v381 = vadd.f32 %v376, %v377
    %382 = vadd.xlane.f32.xlu0 %v381
    %v383 = vpop.xlane.xlu0 %382
    %v384 = vmul.f32 %v380, %v371
    %v385 = vmul.f32 %v383, %v371
    %v386 = vmul.f32 %v372, %v372
    %v387 = vmul.f32 %v373, %v373
    %v388 = vsub.f32 %v384, %v386
    %v389 = vsub.f32 %v385, %v387
    %v390 = vmax.f32 %v388, 0.0
    %v391 = vmax.f32 %v389, 0.0
    %v392 = vadd.f32 %v390, 1e-12
    %v393 = vadd.f32 %v391, 1e-12
    %v394 = vrsqrt.pop %v392
    %v395 = vmul.f32 %v394, %v392
    %v396 = vmul.f32 %v395, %v394
    %v397 = vmul.f32 0.5, %v396
    %v398 = vsub.f32 1.5, %v397
    %v399 = vmul.f32 %v394, %v398
    %vm400 = vweird.f32 %v392
    %vm401 = vweird.f32 %v394
    %vm402 = vmor %vm400, %vm401
    %v403 = vsel %vm402, %v394, %v399
    %v404 = vrsqrt.pop %v393
    %v405 = vmul.f32 %v404, %v393
    %v406 = vmul.f32 %v405, %v404
    %v407 = vmul.f32 0.5, %v406
    %v408 = vsub.f32 1.5, %v407
    %v409 = vmul.f32 %v404, %v408
    %vm410 = vweird.f32 %v393
    %vm411 = vweird.f32 %v404
    %vm412 = vmor %vm410, %vm411
    %v413 = vsel %vm412, %v404, %v409
    %v414 = vsub.f32 %v355, %v372
    %v415 = vsub.f32 %v356, %v372
    %v416 = vsub.f32 %v357, %v373
    %v417 = vsub.f32 %v358, %v373
    %v418 = vmul.f32 %v414, %v403
    %v419 = vmul.f32 %v415, %v403
    %v420 = vmul.f32 %v416, %v413
    %v421 = vmul.f32 %v417, %v413
    %v422 = vld [vmem:[#allocation8] sm:$0x3]
    %v424 = vperm.slane %v422, 0
    %v425 = vperm.slane %v422, 1
    %v428 = vmul.f32 %v418, %v424
    %v429 = vmul.f32 %v419, %v425
    %v430 = vmul.f32 %v420, %v424
    %v431 = vmul.f32 %v421, %v425
    %v432 = vld [vmem:[%s5] sm:$0x3]
    %v434 = vperm.slane %v432, 0
    %v435 = vperm.slane %v432, 1
    %v438 = vadd.f32 %v428, %v434
    %v439 = vadd.f32 %v429, %v435
    %v440 = vadd.f32 %v430, %v434
    %v441 = vadd.f32 %v431, %v435
    %442 = vst [vmem:[#allocation10] sm:$0xff] %v438
    %443 = vst [vmem:[#allocation10 + $0x8] sm:$0xff] %v439
    %444 = vst [vmem:[#allocation10 + $0x10] sm:$0xff] %v440
    %445 = vst [vmem:[#allocation10 + $0x18] sm:$0xff] %v441
    // Predicated region
    $region42: #{tpu_custom_call.1} parent=1 // pred_check
      _
    $region43: #{tpu_custom_call.1} parent=1 // pred_check_branch
      %447 = sbr.rel (0) target = $region45
    $region44: #{tpu_custom_call.1} parent=1 // pred_region
      %449 = vsyncadd [#allocation4], 0
      %s450 = sshll.u32 [#allocation10], 4
      %s451 = int_to_ptr.vmem [resolvable:$true] %s450
      %s452 = sshll.u32 %s6, 4
      %s453 = int_to_ptr.hbm [resolvable:$true] %s452
      %458 = dma.vmem_to_hbm [thread:$0]  %s451, 512, %s453, [#allocation4], 256, 256, 16
    $region45: #{tpu_custom_call.1} parent=1 // pred_fallthru
      _
    // Predicated region
    $region46: #{tpu_custom_call.1} parent=1 // pred_check
      _
    $region47: #{tpu_custom_call.1} parent=1 // pred_check_branch
      %460 = sbr.rel (0) target = $region49
    $region48: #{tpu_custom_call.1} parent=1 // pred_region
      %462 = dma.done [#allocation4], 512
    $region49: #{tpu_custom_call.1} parent=1 // pred_fallthru
      _
    %463 = vsyncpa [#allocation3], 1
    %464 = vsyncpa [#allocation6], 1
    %465 = vsyncpa [#allocation9], 1
    %466 = vsyncpa [#allocation4], 1

</llo_original>
